<compile_context>
chip_gen: v7x
topology: tpu7x:2x2x1
jax: 0.10.0
libtpu: 0.0.40
codegen_flags: <defaults>
</compile_context>

<pallas_src>
import jax
import jax.numpy as jnp
from jax.experimental import pallas as pl
from jax.experimental.pallas import tpu as pltpu


# ---------------------------------------------------------------------------
# helpers
# ---------------------------------------------------------------------------
def _round_up(v, m):
    return ((v + m - 1) // m) * m


def _choose_tiles(n):
    """Pick (n_pad, tm, tk) for the node dimension satisfying TPU block rules."""
    if n >= 512:
        tm, tk = 128, 256
        n_pad = _round_up(n, 256)
    elif n >= 128:
        tm, tk = 128, 128
        n_pad = _round_up(n, 128)
    else:
        tm = 16                      # bf16-friendly sublane tile
        n_pad = _round_up(n, tm)
        tk = n_pad                   # single k-step; block == full array dim
    return n_pad, tm, tk


F_PAD = 128  # lane-dense feature width for the whole GCN stack


# ---------------------------------------------------------------------------
# GCN layer kernel:  out = ReLU( (A @ h) @ W + b ), A streamed in (tm, tk) tiles
# ---------------------------------------------------------------------------
def gcn_layer_kernel(a_ref, h_ref, w_ref, b_ref, o_ref, acc_ref):
    k = pl.program_id(1)

    @pl.when(k == 0)
    def _():
        acc_ref[...] = jnp.zeros_like(acc_ref)

    # bf16 x bf16 -> f32 accumulation on the MXU
    acc_ref[...] += jnp.dot(a_ref[...], h_ref[...],
                            preferred_element_type=jnp.float32)

    @pl.when(k == pl.num_programs(1) - 1)
    def _():
        z = jnp.dot(acc_ref[...].astype(jnp.bfloat16), w_ref[...],
                    preferred_element_type=jnp.float32)
        o_ref[...] = jnp.maximum(z + b_ref[...], 0.0).astype(o_ref.dtype)


def gcn_layer(h, a, w, b, *, tm, tk):
    n_pad, f = h.shape
    grid = (n_pad // tm, n_pad // tk)
    return pl.pallas_call(
        gcn_layer_kernel,
        out_shape=jax.ShapeDtypeStruct((n_pad, f), jnp.bfloat16),
        grid=grid,
        in_specs=[
            pl.BlockSpec((tm, tk), lambda i, k: (i, k)),   # A tile (streamed)
            pl.BlockSpec((tk, f), lambda i, k: (k, 0)),    # h tile (streamed)
            pl.BlockSpec((f, f), lambda i, k: (0, 0)),     # W (resident)
            pl.BlockSpec((1, f), lambda i, k: (0, 0)),     # b (resident)
        ],
        out_specs=pl.BlockSpec((tm, f), lambda i, k: (i, 0)),
        scratch_shapes=[pltpu.VMEM((tm, f), jnp.float32)],
        compiler_params=pltpu.CompilerParams(
            dimension_semantics=("parallel", "arbitrary"),
            vmem_limit_bytes=32 * 1024 * 1024),
    )(a, h, w, b)


# ---------------------------------------------------------------------------
# Pooling (max_mean) + MLP head kernel, grid over node-row tiles
# ---------------------------------------------------------------------------
def make_pool_head_kernel(num_graphs_padded):
    def kernel(h_ref, mask_ref, invc_ref, valid_ref,
               w1a_ref, w1b_ref, b1_ref, w2_ref, b2_ref,
               o_ref, gmax_ref, gsum_ref):
        i = pl.program_id(0)

        @pl.when(i == 0)
        def _():
            gmax_ref[...] = jnp.full_like(gmax_ref, -1e30)
            gsum_ref[...] = jnp.zeros_like(gsum_ref)

        h = h_ref[...].astype(jnp.float32)       # [tm, F]
        mask = mask_ref[...]                     # [tm, Gp] one-hot (f32)
        neg = (mask - 1.0) * 1e30                # 0 for member, -1e30 otherwise

        # per-graph additive-mask reductions (no [tm, Gp, F] broadcast)
        max_rows, sum_rows = [], []
        for g in range(num_graphs_padded):       # small static unroll
            m_g = mask[:, g:g + 1]               # [tm, 1]
            max_rows.append(jnp.max(h + neg[:, g:g + 1], axis=0, keepdims=True))
            sum_rows.append(jnp.sum(h * m_g, axis=0, keepdims=True))
        gmax_ref[...] = jnp.maximum(gmax_ref[...],
                                    jnp.concatenate(max_rows, axis=0))
        gsum_ref[...] += jnp.concatenate(sum_rows, axis=0)

        @pl.when(i == pl.num_programs(0) - 1)
        def _():
            valid = valid_ref[...]                               # [Gp, 1]
            gmax = jnp.where(valid > 0.5, gmax_ref[...], 0.0)    # zero padded graphs
            gmean = gsum_ref[...] * invc_ref[...]                # [Gp, F]

            # cat([gmax, gmean]) @ W1 == gmax @ W1[:F] + gmean @ W1[F:]
            hh = (jnp.dot(gmax.astype(jnp.bfloat16), w1a_ref[...],
                          preferred_element_type=jnp.float32)
                  + jnp.dot(gmean.astype(jnp.bfloat16), w1b_ref[...],
                            preferred_element_type=jnp.float32)
                  + b1_ref[...])
            hh = jnp.maximum(hh, 0.0)
            # TODO(synk): dropout is identity in eval mode; training-mode dropout omitted.
            out = jnp.dot(hh.astype(jnp.bfloat16), w2_ref[...],
                          preferred_element_type=jnp.float32) + b2_ref[...]
            o_ref[...] = out.astype(o_ref.dtype)
    return kernel


def pool_and_head(h, mask_p, invc, valid, w1a, w1b, b1, w2, b2, *, tm):
    n_pad, f = h.shape
    g_pad = mask_p.shape[1]
    h_pad = w1a.shape[1]
    d_pad = w2.shape[1]
    grid = (n_pad // tm,)
    kernel = make_pool_head_kernel(g_pad)
    return pl.pallas_call(
        kernel,
        out_shape=jax.ShapeDtypeStruct((g_pad, d_pad), jnp.float32),
        grid=grid,
        in_specs=[
            pl.BlockSpec((tm, f), lambda i: (i, 0)),         # h tile
            pl.BlockSpec((tm, g_pad), lambda i: (i, 0)),     # mask tile
            pl.BlockSpec((g_pad, 1), lambda i: (0, 0)),      # 1/count
            pl.BlockSpec((g_pad, 1), lambda i: (0, 0)),      # valid-graph mask
            pl.BlockSpec((f, h_pad), lambda i: (0, 0)),      # W1[:F]
            pl.BlockSpec((f, h_pad), lambda i: (0, 0)),      # W1[F:]
            pl.BlockSpec((1, h_pad), lambda i: (0, 0)),      # b1
            pl.BlockSpec((h_pad, d_pad), lambda i: (0, 0)),  # W2
            pl.BlockSpec((1, d_pad), lambda i: (0, 0)),      # b2
        ],
        out_specs=pl.BlockSpec((g_pad, d_pad), lambda i: (0, 0)),
        scratch_shapes=[pltpu.VMEM((g_pad, f), jnp.float32),   # running max
                        pltpu.VMEM((g_pad, f), jnp.float32)],  # running sum
        compiler_params=pltpu.CompilerParams(
            dimension_semantics=("arbitrary",),
            vmem_limit_bytes=32 * 1024 * 1024),
    )(h, mask_p, invc, valid, w1a, w1b, b1, w2, b2)


# ---------------------------------------------------------------------------
# Drug forward wrapper (padding / dtype prep / per-layer pallas_calls)
# ---------------------------------------------------------------------------
def drug_forward(x, a_norm, batch, num_graphs, gnn_params, lin_params):
    n, f_in = x.shape
    n_pad, tm, tk = _choose_tiles(n)
    assert f_in <= F_PAD and all(w.shape[0] <= F_PAD and w.shape[1] <= F_PAD
                                 for (w, _) in gnn_params)

    # bf16, zero-padded operands (padded node rows/cols never leak: A rows/cols are
    # zero for them and pooling masks exclude them).
    a_p = jnp.zeros((n_pad, n_pad), jnp.bfloat16).at[:n, :n].set(
        a_norm.astype(jnp.bfloat16))
    h = jnp.zeros((n_pad, F_PAD), jnp.bfloat16).at[:n, :f_in].set(
        x.astype(jnp.bfloat16))

    # GCN stack, one tiled pallas_call per layer (h round-trips HBM as bf16 [N,128],
    # which is tiny compared to streaming O(N^2) A tiles).
    for (w, b) in gnn_params:
        fi, fo = w.shape
        w_p = jnp.zeros((F_PAD, F_PAD), jnp.bfloat16).at[:fi, :fo].set(
            w.astype(jnp.bfloat16))
        b_p = jnp.zeros((1, F_PAD), jnp.float32).at[0, :fo].set(b)
        h = gcn_layer(h, a_p, w_p, b_p, tm=tm, tk=tk)

    feat = gnn_params[-1][0].shape[1]
    (w1, b1), (w2, b2) = lin_params
    assert w1.shape[0] == 2 * feat, "head expects concat([max, mean]) of final GCN features"
    hid, out_dim = w1.shape[1], w2.shape[1]
    h_pad = _round_up(hid, 128)
    d_pad = _round_up(out_dim, 128)
    g_pad = max(8, _round_up(num_graphs, 8))

    w1a = jnp.zeros((F_PAD, h_pad), jnp.bfloat16).at[:feat, :hid].set(
        w1[:feat].astype(jnp.bfloat16))
    w1b = jnp.zeros((F_PAD, h_pad), jnp.bfloat16).at[:feat, :hid].set(
        w1[feat:].astype(jnp.bfloat16))
    b1_p = jnp.zeros((1, h_pad), jnp.float32).at[0, :hid].set(b1)
    w2_p = jnp.zeros((h_pad, d_pad), jnp.bfloat16).at[:hid, :out_dim].set(
        w2.astype(jnp.bfloat16))
    b2_p = jnp.zeros((1, d_pad), jnp.float32).at[0, :out_dim].set(b2)

    mask = (batch[:, None] == jnp.arange(num_graphs)[None, :]).astype(jnp.float32)
    mask_p = jnp.zeros((n_pad, g_pad), jnp.float32).at[:n, :num_graphs].set(mask)
    counts = mask.sum(axis=0)
    invc = jnp.zeros((g_pad, 1), jnp.float32).at[:num_graphs, 0].set(1.0 / counts)
    valid = jnp.zeros((g_pad, 1), jnp.float32).at[:num_graphs, 0].set(1.0)

    out_p = pool_and_head(h, mask_p, invc, valid, w1a, w1b, b1_p, w2_p, b2_p, tm=tm)
    return out_p[:num_graphs, :out_dim]


# ---------------------------------------------------------------------------
# pure-JAX f32 reference (for sanity checking)
# ---------------------------------------------------------------------------
def drug_reference(x, a_norm, batch, num_graphs, gnn_params, lin_params):
    h = x
    for (w, b) in gnn_params:
        h = jnp.maximum(a_norm @ (h @ w) + b[None, :], 0.0)
    mask = batch[:, None] == jnp.arange(num_graphs)[None, :]
    gmax = jnp.max(jnp.where(mask[:, :, None], h[:, None, :], -jnp.inf), axis=0)
    counts = mask.sum(axis=0).astype(jnp.float32)
    gmean = (mask.astype(jnp.float32).T @ h) / counts[:, None]
    (w1, b1), (w2, b2) = lin_params
    hh = jnp.maximum(jnp.concatenate([gmax, gmean], axis=1) @ w1 + b1[None, :], 0.0)
    return hh @ w2 + b2[None, :]


# ---------------------------------------------------------------------------
# main
# ---------------------------------------------------------------------------
if __name__ == "__main__":
    key = jax.random.PRNGKey(0)

    # ----- module hyper-parameters (matching Drug.__init__ arguments) -----
    input_drug_feature_dim = 32
    output_drug_feature_dim = 100
    gnn_dims = [(32, 64), (64, 64), (64, 128)]                   # GCNConv x3
    linear_dims = [(256, 128), (128, output_drug_feature_dim)]   # linear/relu/dropout/linear

    # ----- synthetic graph batch: 2 graphs, 16 nodes each -----
    num_graphs = 2
    nodes_per_graph = 16
    n_nodes = num_graphs * nodes_per_graph
    batch = jnp.array([g for g in range(num_graphs) for _ in range(nodes_per_graph)],
                      dtype=jnp.int32)

    # ring edges inside each graph (symmetric)
    src, dst = [], []
    for g in range(num_graphs):
        base = g * nodes_per_graph
        for i in range(nodes_per_graph):
            s, t = base + i, base + (i + 1) % nodes_per_graph
            src += [s, t]
            dst += [t, s]
    edge_index = jnp.array([src, dst], dtype=jnp.int32)

    # dense GCN-normalized adjacency: D^{-1/2} (A + I) D^{-1/2}
    adj = jnp.zeros((n_nodes, n_nodes), jnp.float32)
    adj = adj.at[edge_index[1], edge_index[0]].set(1.0)
    adj_hat = adj + jnp.eye(n_nodes, dtype=jnp.float32)
    deg = adj_hat.sum(axis=1)
    d_inv_sqrt = 1.0 / jnp.sqrt(deg)
    a_norm = d_inv_sqrt[:, None] * adj_hat * d_inv_sqrt[None, :]

    # node features
    key, k_x = jax.random.split(key)
    x = jax.random.normal(k_x, (n_nodes, input_drug_feature_dim), jnp.float32)

    # ----- deterministic parameter init -----
    gnn_params = []
    for (fi, fo) in gnn_dims:
        key, kw, kb = jax.random.split(key, 3)
        gnn_params.append((jax.random.normal(kw, (fi, fo), jnp.float32) * 0.1,
                           jax.random.normal(kb, (fo,), jnp.float32) * 0.01))
    lin_params = []
    for (fi, fo) in linear_dims:
        key, kw, kb = jax.random.split(key, 3)
        lin_params.append((jax.random.normal(kw, (fi, fo), jnp.float32) * 0.1,
                           jax.random.normal(kb, (fo,), jnp.float32) * 0.01))

    out = drug_forward(x, a_norm, batch, num_graphs, gnn_params, lin_params)
    out = jax.block_until_ready(out)
    assert out.shape == (num_graphs, output_drug_feature_dim), out.shape

    ref = drug_reference(x, a_norm, batch, num_graphs, gnn_params, lin_params)
    err = float(jnp.max(jnp.abs(out - ref)))
    scale = float(jnp.max(jnp.abs(ref)))
    assert err <= 0.05 * scale + 0.05, (err, scale)   # bf16-MXU tolerance
    print("KERNEL_OK")
</pallas_src>

<mosaic_0001>
module attributes {stable_mosaic.version = 11 : i64} {
  func.func @gcn_layer_kernel(%arg0: i32, %arg1: i32, %arg2: memref<16x32xbf16, #tpu.memory_space<vmem>>, %arg3: memref<32x128xbf16, #tpu.memory_space<vmem>>, %arg4: memref<128x128xbf16, #tpu.memory_space<vmem>>, %arg5: memref<1x128xf32, #tpu.memory_space<vmem>>, %arg6: memref<16x128xbf16, #tpu.memory_space<vmem>>, %arg7: memref<16x128xf32, #tpu.memory_space<vmem>>) attributes {dimension_semantics = [#tpu.dimension_semantics<parallel>, #tpu.dimension_semantics<arbitrary>], iteration_bounds = array<i64: 2, 1>, scalar_prefetch = 0 : i64, scratch_operands = 1 : i64, tpu.core_type = #tpu.core_type<tc>, window_params = [{transform_indices = @transform_0, window_bounds = array<i64: 16, 32>}, {transform_indices = @transform_1, window_bounds = array<i64: 32, 128>}, {pipeline_mode = #tpu.pipeline_mode<synchronous>, transform_indices = @transform_2, window_bounds = array<i64: 128, 128>}, {pipeline_mode = #tpu.pipeline_mode<synchronous>, transform_indices = @transform_3, window_bounds = array<i64: 1, 128>}, {transform_indices = @transform_4, window_bounds = array<i64: 16, 128>}]} {
    %c0_i32 = arith.constant 0 : i32
    %0 = arith.cmpi eq, %arg1, %c0_i32 : i32
    %1 = arith.extui %0 : i1 to i32
    %c0_i32_0 = arith.constant 0 : i32
    %2 = arith.cmpi ne, %1, %c0_i32_0 : i32
    scf.if %2 {
      %cst_10 = arith.constant 0.000000e+00 : f32
      %12 = vector.broadcast %cst_10 : f32 to vector<16x128xf32>
      %c0_11 = arith.constant 0 : index
      %c0_12 = arith.constant 0 : index
      %13 = vector.load %arg7[%c0_11, %c0_12] : memref<16x128xf32, #tpu.memory_space<vmem>>, vector<16x128xf32>
      tpu.vector_store %arg7[%c0_11, %c0_12], %12 {strides = array<i32>} : memref<16x128xf32, #tpu.memory_space<vmem>>, vector<16x128xf32>,
    } else {
    }
    %c0 = arith.constant 0 : index
    %c0_1 = arith.constant 0 : index
    %3 = vector.load %arg7[%c0, %c0_1] : memref<16x128xf32, #tpu.memory_space<vmem>>, vector<16x128xf32>
    %c0_2 = arith.constant 0 : index
    %c0_3 = arith.constant 0 : index
    %4 = vector.load %arg2[%c0_2, %c0_3] : memref<16x32xbf16, #tpu.memory_space<vmem>>, vector<16x32xbf16>
    %c0_4 = arith.constant 0 : index
    %c0_5 = arith.constant 0 : index
    %5 = vector.load %arg3[%c0_4, %c0_5] : memref<32x128xbf16, #tpu.memory_space<vmem>>, vector<32x128xbf16>
    %cst = arith.constant dense<0.000000e+00> : vector<16x128xf32>
    %6 = tpu.matmul %4, %5, %cst {dimension_numbers = #tpu.dot_dimension_numbers<[1], [0], [0], [1], [0, 0, 1, 1], [], []>} : vector<16x32xbf16>, vector<32x128xbf16>, vector<16x128xf32> -> vector<16x128xf32>
    %7 = arith.addf %3, %6 : vector<16x128xf32>
    %c0_6 = arith.constant 0 : index
    %c0_7 = arith.constant 0 : index
    %8 = vector.load %arg7[%c0_6, %c0_7] : memref<16x128xf32, #tpu.memory_space<vmem>>, vector<16x128xf32>
    tpu.vector_store %arg7[%c0_6, %c0_7], %7 {strides = array<i32>} : memref<16x128xf32, #tpu.memory_space<vmem>>, vector<16x128xf32>,
    %c0_i32_8 = arith.constant 0 : i32
    %9 = arith.cmpi eq, %arg1, %c0_i32_8 : i32
    %10 = arith.extui %9 : i1 to i32
    %c0_i32_9 = arith.constant 0 : i32
    %11 = arith.cmpi ne, %10, %c0_i32_9 : i32
    scf.if %11 {
      %c0_10 = arith.constant 0 : index
      %c0_11 = arith.constant 0 : index
      %12 = vector.load %arg7[%c0_10, %c0_11] : memref<16x128xf32, #tpu.memory_space<vmem>>, vector<16x128xf32>
      %13 = arith.truncf %12 : vector<16x128xf32> to vector<16x128xbf16>
      %c0_12 = arith.constant 0 : index
      %c0_13 = arith.constant 0 : index
      %14 = vector.load %arg4[%c0_12, %c0_13] : memref<128x128xbf16, #tpu.memory_space<vmem>>, vector<128x128xbf16>
      %cst_14 = arith.constant dense<0.000000e+00> : vector<16x128xf32>
      %15 = tpu.matmul %13, %14, %cst_14 {dimension_numbers = #tpu.dot_dimension_numbers<[1], [0], [0], [1], [0, 0, 1, 1], [], []>} : vector<16x128xbf16>, vector<128x128xbf16>, vector<16x128xf32> -> vector<16x128xf32>
      %c0_15 = arith.constant 0 : index
      %c0_16 = arith.constant 0 : index
      %16 = vector.load %arg5[%c0_15, %c0_16] : memref<1x128xf32, #tpu.memory_space<vmem>>, vector<1x128xf32>
      %17 = vector.broadcast %16 : vector<1x128xf32> to vector<16x128xf32>
      %18 = arith.addf %15, %17 : vector<16x128xf32>
      %cst_17 = arith.constant 0.000000e+00 : f32
      %19 = vector.broadcast %cst_17 : f32 to vector<16x128xf32>
      %20 = arith.maximumf %18, %19 : vector<16x128xf32>
      %21 = arith.truncf %20 : vector<16x128xf32> to vector<16x128xbf16>
      %c0_18 = arith.constant 0 : index
      %c0_19 = arith.constant 0 : index
      %22 = vector.load %arg6[%c0_18, %c0_19] : memref<16x128xbf16, #tpu.memory_space<vmem>>, vector<16x128xbf16>
      tpu.vector_store %arg6[%c0_18, %c0_19], %21 {strides = array<i32>} : memref<16x128xbf16, #tpu.memory_space<vmem>>, vector<16x128xbf16>,
    } else {
    }
    return
  }
  func.func @transform_0(%arg0: i32, %arg1: i32) -> (i32, i32) {
    %c0_i32 = arith.constant 0 : i32
    return %arg0, %arg1 : i32, i32
  }
  func.func @transform_1(%arg0: i32, %arg1: i32) -> (i32, i32) {
    %c0_i32 = arith.constant 0 : i32
    %c0_i32_0 = arith.constant 0 : i32
    return %arg1, %c0_i32 : i32, i32
  }
  func.func @transform_2(%arg0: i32, %arg1: i32) -> (i32, i32) {
    %c0_i32 = arith.constant 0 : i32
    %c0_i32_0 = arith.constant 0 : i32
    %c0_i32_1 = arith.constant 0 : i32
    return %c0_i32, %c0_i32_0 : i32, i32
  }
  func.func @transform_3(%arg0: i32, %arg1: i32) -> (i32, i32) {
    %c0_i32 = arith.constant 0 : i32
    %c0_i32_0 = arith.constant 0 : i32
    %c0_i32_1 = arith.constant 0 : i32
    return %c0_i32, %c0_i32_0 : i32, i32
  }
  func.func @transform_4(%arg0: i32, %arg1: i32) -> (i32, i32) {
    %c0_i32 = arith.constant 0 : i32
    %c0_i32_0 = arith.constant 0 : i32
    return %arg0, %c0_i32 : i32, i32
  }
}

</mosaic_0001>

<llo_original>
// kernel: tpu_custom_call.1
$region0: #{tpu_custom_call.1}
  #allocation0 [shape = 'u32[]', space=smem, size = 0x4, offset = 0x4, fixed_abs, tag = 'smem constant byte address 0x4 - core index']
  #allocation1 [shape = 'u32[144,128]{1,0:T(1,128)}', space=vmem, size = 0x12000, scoped, tag = 'internal scratch']
  #allocation2 [shape = 'f32[16,128]{1,0:T(8,128)}', space=vmem, size = 0x2000, scoped, tag = 'scratch operand']
  %s0 = inlined_call_operand.hbm [shape: bf16[32,32], index: 0, kind: input, shape index: {}]
  %s1 = inlined_call_operand.hbm [shape: bf16[32,128], index: 1, kind: input, shape index: {}]
  %s2 = inlined_call_operand.hbm [shape: bf16[128,128], index: 2, kind: input, shape index: {}]
  %s3 = inlined_call_operand.vmem [shape: f32[1,128], index: 3, kind: input, shape index: {}]
  %s4 = inlined_call_operand.hbm [shape: bf16[32,128], index: 4, kind: output, shape index: {}]
  %s5 = sld [smem:[#allocation0]]
  $region69: #{tpu_custom_call.1} parent=0
    _
  %s7 = ssub.s32 1, %s5
  %s8 = scalar_select 0, %s7, %s5
  $region1: #{tpu_custom_call.1} parent=0
    #allocation3 [shape = 'u8[8192]{0}', space=vmem, size = 0x2000, scoped, tag = 'input window, operand 0']
    #allocation4 [shape = 's32[2]{0}', space=sflag, size = 0x8, scoped, tag = 'scoped memory for tpu_custom_call.1']
    #allocation5 [shape = 's32[2]{0}', space=sflag, size = 0x8, scoped, tag = 'scoped memory for tpu_custom_call.1']
    #allocation6 [shape = 'u8[8192]{0}', space=vmem, size = 0x2000, scoped, tag = 'input window, operand 1, single buffered']
    #allocation7 [shape = 's32[1]{0}', space=sflag, size = 0x4, scoped, tag = 'scoped memory for tpu_custom_call.1']
    #allocation8 [shape = 'u8[32768]{0}', space=vmem, size = 0x8000, scoped, tag = 'input window, operand 2, single buffered']
    #allocation9 [shape = 'u8[8192]{0}', space=vmem, size = 0x2000, scoped, tag = 'output window, operand 0']
    %9 = vsyncpa [#allocation4], 0
    %s10 = scalar_lea.sflag [#allocation4], 1
    %11 = vsyncpa %s10, 0
    %12 = vsyncpa [#allocation7], 0
    %13 = vsyncpa [#allocation5], 0
    %s14 = scalar_lea.sflag [#allocation5], 1
    %15 = vsyncpa %s14, 0
    loop: start=0, step=1, limit=4
    $region2: #{tpu_custom_call.1} parent=1 // loop_pre_header
      _
    $region3: #{tpu_custom_call.1} parent=1 // loop_header
      %s17 = sphi 0, %s21
      %p18 = scmp.ge.s32.totalorder %s17, 4
      %s24 = sphi 0, %s36
      %s25 = sphi 0, %s32
      %s26 = sphi 0, %s24
      %s27 = sphi 0, %s25
      %s28 = sphi 0, %s26
      %s29 = sphi 0, %s27
      %s41 = sphi 0, %s43
      %s44 = sphi 0, %s41
      %s45 = sphi 0, %s44
      %s61 = sphi 0, %s45
      %s67 = sphi 0, %s69
      %s70 = sphi 0, %s67
      %s71 = sphi 0, %s70
      %s87 = sphi 0, %s71
      %s91 = sphi 0, %s91
      %s93 = sphi 0, %s91
      %s94 = sphi 0, %s93
      %s108 = sphi 0, %s94
      %s112 = sphi 0, %s112
      %s114 = sphi 0, %s112
      %s115 = sphi 0, %s114
      %s129 = sphi 0, %s115
      %s135 = sphi 0, %s137
      %s138 = sphi 0, %s135
      %s139 = sphi 0, %s138
      %s155 = sphi 0, %s139
    $region4: #{tpu_custom_call.1} parent=1 // loop_header_branch
      %20 = sbr.rel (%p18) target = $region8
    $region5: #{tpu_custom_call.1} parent=1 // loop_body
      %s22 = ssub.s32 %s17, 1
      %s23 = ssub.s32 %s17, 2
      %s30 = sadd.s32 1, %s25
      %p31 = scmp.ge.s32.totalorder %s30, 1
      %s32 = scalar_select %p31, 0, %s30
      %s33 = sadd.s32 1, %s24
      %s34 = scalar_select %p31, %s33, %s24
      %p35 = scmp.ge.s32.totalorder %s34, 2
      %s36 = scalar_select %p35, 0, %s34
      %s37 = ssub.s32 %s24, %s36
      %s38 = ssub.s32 %s25, %s32
      %s39 = sor.u32 %s37, %s38
      %p40 = scmp.eq.s32.totalorder %s39, 0
      %s42 = sadd.s32 %s41, 1
      %s43 = scalar_select %p40, %s41, %s42
      %p46 = pneg %p40
      %p47 = scmp.eq.s32.totalorder %s17, 1
      %p48 = por %p46, %p47
      %p49 = scmp.ne.s32.totalorder %s41, %s44
      %p50 = scmp.eq.s32.totalorder %s17, 0
      %p51 = por %p49, %p50
      %p52 = scmp.ne.s32.totalorder %s41, %s44
      %p53 = scmp.eq.s32.totalorder %s22, 1
      %p54 = por %p52, %p53
      %p55 = scmp.ne.s32.totalorder %s44, %s45
      %p56 = scmp.eq.s32.totalorder %s22, 0
      %p57 = por %p55, %p56
      %p58 = scmp.ne.s32.totalorder %s44, %s45
      %p59 = scmp.eq.s32.totalorder %s23, 1
      %p60 = por %p58, %p59
      %p62 = scmp.ne.s32.totalorder %s45, %s61
      %p63 = scmp.eq.s32.totalorder %s23, 0
      %p64 = por %p62, %p63
      %s65 = ssub.s32 %s25, %s32
      %p66 = scmp.eq.s32.totalorder %s65, 0
      %s68 = sadd.s32 %s67, 1
      %s69 = scalar_select %p66, %s67, %s68
      %p72 = pneg %p66
      %p73 = scmp.eq.s32.totalorder %s17, 1
      %p74 = por %p72, %p73
      %p75 = scmp.ne.s32.totalorder %s67, %s70
      %p76 = scmp.eq.s32.totalorder %s17, 0
      %p77 = por %p75, %p76
      %p78 = scmp.ne.s32.totalorder %s67, %s70
      %p79 = scmp.eq.s32.totalorder %s22, 1
      %p80 = por %p78, %p79
      %p81 = scmp.ne.s32.totalorder %s70, %s71
      %p82 = scmp.eq.s32.totalorder %s22, 0
      %p83 = por %p81, %p82
      %p84 = scmp.ne.s32.totalorder %s70, %s71
      %p85 = scmp.eq.s32.totalorder %s23, 1
      %p86 = por %p84, %p85
      %p88 = scmp.ne.s32.totalorder %s71, %s87
      %p89 = scmp.eq.s32.totalorder %s23, 0
      %p90 = por %p88, %p89
      %s92 = sadd.s32 %s91, 1
      %p95 = scmp.eq.s32.totalorder %s17, 1
      %p96 = scmp.ne.s32.totalorder %s91, %s93
      %p97 = scmp.eq.s32.totalorder %s17, 0
      %p98 = por %p96, %p97
      %p99 = scmp.ne.s32.totalorder %s91, %s93
      %p100 = scmp.eq.s32.totalorder %s22, 1
      %p101 = por %p99, %p100
      %p102 = scmp.ne.s32.totalorder %s93, %s94
      %p103 = scmp.eq.s32.totalorder %s22, 0
      %p104 = por %p102, %p103
      %p105 = scmp.ne.s32.totalorder %s93, %s94
      %p106 = scmp.eq.s32.totalorder %s23, 1
      %p107 = por %p105, %p106
      %p109 = scmp.ne.s32.totalorder %s94, %s108
      %p110 = scmp.eq.s32.totalorder %s23, 0
      %p111 = por %p109, %p110
      %s113 = sadd.s32 %s112, 1
      %p116 = scmp.eq.s32.totalorder %s17, 1
      %p117 = scmp.ne.s32.totalorder %s112, %s114
      %p118 = scmp.eq.s32.totalorder %s17, 0
      %p119 = por %p117, %p118
      %p120 = scmp.ne.s32.totalorder %s112, %s114
      %p121 = scmp.eq.s32.totalorder %s22, 1
      %p122 = por %p120, %p121
      %p123 = scmp.ne.s32.totalorder %s114, %s115
      %p124 = scmp.eq.s32.totalorder %s22, 0
      %p125 = por %p123, %p124
      %p126 = scmp.ne.s32.totalorder %s114, %s115
      %p127 = scmp.eq.s32.totalorder %s23, 1
      %p128 = por %p126, %p127
      %p130 = scmp.ne.s32.totalorder %s115, %s129
      %p131 = scmp.eq.s32.totalorder %s23, 0
      %p132 = por %p130, %p131
      %s133 = ssub.s32 %s24, %s36
      %p134 = scmp.eq.s32.totalorder %s133, 0
      %s136 = sadd.s32 %s135, 1
      %s137 = scalar_select %p134, %s135, %s136
      %p140 = pneg %p134
      %p141 = scmp.eq.s32.totalorder %s17, 1
      %p142 = por %p140, %p141
      %p143 = scmp.ne.s32.totalorder %s135, %s138
      %p144 = scmp.eq.s32.totalorder %s17, 0
      %p145 = por %p143, %p144
      %p146 = scmp.ne.s32.totalorder %s135, %s138
      %p147 = scmp.eq.s32.totalorder %s22, 1
      %p148 = por %p146, %p147
      %p149 = scmp.ne.s32.totalorder %s138, %s139
      %p150 = scmp.eq.s32.totalorder %s22, 0
      %p151 = por %p149, %p150
      %p152 = scmp.ne.s32.totalorder %s138, %s139
      %p153 = scmp.eq.s32.totalorder %s23, 1
      %p154 = por %p152, %p153
      %p156 = scmp.ne.s32.totalorder %s139, %s155
      %p157 = scmp.eq.s32.totalorder %s23, 0
      %p158 = por %p156, %p157
      %p159 = scmp.le.s32.totalorder 1, %s17
      %p160 = scmp.lt.s32.totalorder %s17, 3
      %p161 = pnand %p159, %p160
      %p162 = pneg %p161
      // Predicated region
      $region9: #{tpu_custom_call.1} parent=5 // pred_check
        _
      $region10: #{tpu_custom_call.1} parent=5 // pred_check_branch
        %164 = sbr.rel (%p161) target = $region12
      $region11: #{tpu_custom_call.1} parent=5 // pred_region
        %s165 = ssub.s32 %s17, 1
        // Predicated region
        $region13: #{tpu_custom_call.1} parent=11 // pred_check
          %p166 = pneg %p83
        $region14: #{tpu_custom_call.1} parent=11 // pred_check_branch
          %168 = sbr.rel (%p166) target = $region16
        $region15: #{tpu_custom_call.1} parent=11 // pred_region
          %s169 = smul.u32 4, %s27
          %s171 = ssub.s32 256, 256
          %172 = vsyncadd [#allocation7], %s171
          %s173 = smul.addr %s169, 64
          %s174 = scalar_lea.hbm %s1, %s173
          %s175 = sshll.u32 [#allocation6], 4
          %s176 = int_to_ptr.vmem [resolvable:$true] %s175
          %181 = dma.hbm_to_vmem [thread:$0]  %s174, 256, %s176, [#allocation7], 64, 64, 4
        $region16: #{tpu_custom_call.1} parent=11 // pred_fallthru
          _
        // Predicated region
        $region17: #{tpu_custom_call.1} parent=11 // pred_check
          %p182 = pneg %p104
        $region18: #{tpu_custom_call.1} parent=11 // pred_check_branch
          %184 = sbr.rel (%p182) target = $region20
        $region19: #{tpu_custom_call.1} parent=11 // pred_region
          %s186 = ssub.s32 1024, 1024
          %187 = vsyncadd [#allocation7], %s186
          %s188 = sshll.u32 [#allocation8], 4
          %s189 = int_to_ptr.vmem [resolvable:$true] %s188
          %194 = dma.hbm_to_vmem [thread:$0]  %s2, 1024, %s189, [#allocation7], 64, 64, 4
        $region20: #{tpu_custom_call.1} parent=11 // pred_fallthru
          _
        // Predicated region
        $region21: #{tpu_custom_call.1} parent=11 // pred_check
          %p195 = pneg %p125
        $region22: #{tpu_custom_call.1} parent=11 // pred_check_branch
          %197 = sbr.rel (%p195) target = $region24
        $region23: #{tpu_custom_call.1} parent=11 // pred_region
          _
        $region24: #{tpu_custom_call.1} parent=11 // pred_fallthru
          _
      $region12: #{tpu_custom_call.1} parent=5 // pred_fallthru
        _
      %p198 = scmp.lt.s32.totalorder %s17, 2
      // Predicated region
      $region25: #{tpu_custom_call.1} parent=5 // pred_check
        %p199 = pneg %p198
      $region26: #{tpu_custom_call.1} parent=5 // pred_check_branch
        %201 = sbr.rel (%p199) target = $region28
      $region27: #{tpu_custom_call.1} parent=5 // pred_region
        // Predicated region
        $region29: #{tpu_custom_call.1} parent=27 // pred_check
          %p202 = pneg %p51
        $region30: #{tpu_custom_call.1} parent=27 // pred_check_branch
          %204 = sbr.rel (%p202) target = $region32
        $region31: #{tpu_custom_call.1} parent=27 // pred_region
          %s205 = sand.u32 %s41, 1
          %s206 = scalar_lea.sflag [#allocation4], %s205
          %s207 = sand.u32 %s41, 1
          %s208 = smul.addr %s207, 8
          %s209 = scalar_lea.vmem [#allocation3], %s208
          %s210 = smul.u32 2, %s24
          %s212 = ssub.s32 128, 128
          %213 = vsyncadd %s206, %s212
          %s214 = sadd.s32 %s25, %s210
          %s215 = smul.addr %s214, 64
          %s216 = scalar_lea.hbm %s0, %s215
          %s217 = sshll.u32 %s209, 4
          %s218 = int_to_ptr.vmem [resolvable:$true] %s217
          %223 = dma.hbm_to_vmem [thread:$0]  %s216, 128, %s218, %s206, 64, 64, 4
        $region32: #{tpu_custom_call.1} parent=27 // pred_fallthru
          _
      $region28: #{tpu_custom_call.1} parent=5 // pred_fallthru
        _
      %p224 = scmp.le.s32.totalorder 1, %s17
      %p225 = scmp.lt.s32.totalorder %s17, 3
      %p226 = pnand %p224, %p225
      %p227 = pneg %p226
      // Predicated region
      $region33: #{tpu_custom_call.1} parent=5 // pred_check
        _
      $region34: #{tpu_custom_call.1} parent=5 // pred_check_branch
        %229 = sbr.rel (%p226) target = $region36
      $region35: #{tpu_custom_call.1} parent=5 // pred_region
        %s230 = ssub.s32 %s17, 1
        %s231 = sand.u32 %s44, 1
        %s232 = scalar_lea.sflag [#allocation4], %s231
        %s233 = sand.u32 %s44, 1
        %s234 = smul.addr %s233, 8
        %s235 = scalar_lea.vmem [#allocation3], %s234
        // Predicated region
        $region37: #{tpu_custom_call.1} parent=35 // pred_check
          %p236 = pneg %p57
        $region38: #{tpu_custom_call.1} parent=35 // pred_check_branch
          %238 = sbr.rel (%p236) target = $region40
        $region39: #{tpu_custom_call.1} parent=35 // pred_region
          %239 = dma.done %s232, 128
        $region40: #{tpu_custom_call.1} parent=35 // pred_fallthru
          _
        // Predicated region
        $region41: #{tpu_custom_call.1} parent=35 // pred_check
          %p240 = pneg %p83
        $region42: #{tpu_custom_call.1} parent=35 // pred_check_branch
          %242 = sbr.rel (%p240) target = $region44
        $region43: #{tpu_custom_call.1} parent=35 // pred_region
          %243 = dma.done [#allocation7], 256
        $region44: #{tpu_custom_call.1} parent=35 // pred_fallthru
          _
        // Predicated region
        $region45: #{tpu_custom_call.1} parent=35 // pred_check
          %p244 = pneg %p104
        $region46: #{tpu_custom_call.1} parent=35 // pred_check_branch
          %246 = sbr.rel (%p244) target = $region48
        $region47: #{tpu_custom_call.1} parent=35 // pred_region
          %247 = dma.done [#allocation7], 1024
        $region48: #{tpu_custom_call.1} parent=35 // pred_fallthru
          _
        %s248 = sand.u32 %s44, 1
        %s249 = scalar_lea.sflag [#allocation4], %s248
        %s250 = sand.u32 %s44, 1
        %s251 = smul.addr %s250, 8
        %s252 = scalar_lea.vmem [#allocation3], %s251
        %p253 = pneg %p57
        %p254 = pneg %p54
        %p255 = pneg %p83
        %p256 = pneg %p80
        %p257 = pneg %p104
        %p258 = pneg %p101
        %p259 = pneg %p125
        %p260 = pneg %p122
        %p261 = pneg %p151
        %p262 = pneg %p148
        %s263 = sand.u32 %s138, 1
        %s264 = scalar_lea.sflag [#allocation5], %s263
        %s265 = sand.u32 %s138, 1
        %s266 = smul.addr %s265, 8
        %s267 = scalar_lea.vmem [#allocation9], %s266
        %s268 = smul.u32 2, %s26
        %s269 = smul.u32 4, %s27
        %s270 = smul.u32 2, %s26
        %p272 = scmp.eq.s32.totalorder %s27, 0
        // Predicated region
        $region49: #{tpu_custom_call.1} parent=35 // pred_check
          %p273 = pneg %p272
        $region50: #{tpu_custom_call.1} parent=35 // pred_check_branch
          %275 = sbr.rel (%p273) target = $region52
        $region51: #{tpu_custom_call.1} parent=35 // pred_region
          %276 = vst [vmem:[#allocation2] sm:$0xff] 0.0
          %277 = vst [vmem:[#allocation2 + $0x8] sm:$0xff] 0.0
        $region52: #{tpu_custom_call.1} parent=35 // pred_fallthru
          _
        %v278 = vld [vmem:[#allocation2] sm:$0xff]
        %v279 = vld [vmem:[#allocation2 + $0x8] sm:$0xff]
        %v280 = vld [vmem:[%s235] sm:$0xf]
        %v281 = vld [vmem:[%s235 + $0x4] sm:$0xf]
        %v282 = vld [vmem:[#allocation6] sm:$0xf]
        %v283 = vld [vmem:[#allocation6 + $0x4] sm:$0xf]
        %v284 = vld [vmem:[#allocation6 + $0x8] sm:$0xf]
        %v285 = vld [vmem:[#allocation6 + $0xc] sm:$0xf]
        %v288 = vunpack.c.l.b16 %v280
        %v289 = vunpack.c.l.b16 %v281
        %v290 = vpack.c.b16 %v289, %v288
        %v295 = vunpack.c.l.b16 %v282
        %v296 = vunpack.c.l.b16 %v283
        %v297 = vunpack.c.l.b16 %v284
        %v298 = vunpack.c.l.b16 %v285
        %v299 = vpack.c.b16 %v296, %v295
        %v300 = vpack.c.b16 %v298, %v297
        %vm303 = vcmask 261120
        %v305 = vsel %vm303, %v290, 0
        %307 = vmatprep.subr.bf16.mxu0 0
        %308 = vmatpush1.bf16.msra.mxu0 %v299
        %309 = vmatprep.subr.bf16.mxu0 0
        %310 = vmatpush1.bf16.msra.mxu0 %v300
        %311 = vmatprep.subr.bf16.mxu0 0
        %312 = vmatpush1.bf16.msra.mxu0 0
        %313 = vmatprep.subr.bf16.mxu0 0
        %314 = vmatpush1.bf16.msra.mxu0 0
        %315 = vmatprep.subr.bf16.mxu0 0
        %316 = vmatpush1.bf16.msra.mxu0 0
        %317 = vmatprep.subr.bf16.mxu0 0
        %318 = vmatpush1.bf16.msra.mxu0 0
        %319 = vmatprep.subr.bf16.mxu0 0
        %320 = vmatpush1.bf16.msra.mxu0 0
        %321 = vmatprep.subr.bf16.mxu0 0
        %322 = vmatpush1.bf16.msra.mxu0 0
        %323 = vmatprep.subr.bf16.mxu0 0
        %324 = vmatpush1.bf16.msra.mxu0 0
        %325 = vmatprep.subr.bf16.mxu0 0
        %326 = vmatpush1.bf16.msra.mxu0 0
        %327 = vmatprep.subr.bf16.mxu0 0
        %328 = vmatpush1.bf16.msra.mxu0 0
        %329 = vmatprep.subr.bf16.mxu0 0
        %330 = vmatpush1.bf16.msra.mxu0 0
        %331 = vmatprep.subr.bf16.mxu0 0
        %332 = vmatpush1.bf16.msra.mxu0 0
        %333 = vmatprep.subr.bf16.mxu0 0
        %334 = vmatpush1.bf16.msra.mxu0 0
        %335 = vmatprep.subr.bf16.mxu0 0
        %336 = vmatpush1.bf16.msra.mxu0 0
        %337 = vmatprep.subr.bf16.mxu0 0
        %338 = vmatpush1.bf16.msra.mxu0 0
        %339 = vmatprep.mubr.bf16.mxu0 0
        %340 = vmatmul.mubr.bf16.gmra.mrb[0].mxu0 %v305
        %v341 = vpop.f32.mrb[0].mxu0
        %v342 = vadd.f32 0.0, %v341
        %v343 = vpop.f32.mrb[0].mxu0
        %v344 = vpop.f32.mrb[0].mxu0
        %v345 = vadd.f32 0.0, %v344
        %v346 = vpop.f32.mrb[0].mxu0
        %347 = vdwg.mxu0
        %v348 = vadd.f32 %v278, %v342
        %v349 = vadd.f32 %v279, %v345
        %350 = vst [vmem:[#allocation2] sm:$0xff] %v348
        %351 = vst [vmem:[#allocation2 + $0x8] sm:$0xff] %v349
        // Predicated region
        $region53: #{tpu_custom_call.1} parent=35 // pred_check
          %p352 = pneg %p272
        $region54: #{tpu_custom_call.1} parent=35 // pred_check_branch
          %354 = sbr.rel (%p352) target = $region56
        $region55: #{tpu_custom_call.1} parent=35 // pred_region
          %v355 = vld [vmem:[#allocation2] sm:$0xff]
          %v356 = vld [vmem:[#allocation2 + $0x8] sm:$0xff]
          %v357 = vpack.c.bf16 %v356, %v355
          %v358 = vld [vmem:[#allocation8] sm:$0xf]
          %v359 = vld [vmem:[#allocation8 + $0x4] sm:$0xf]
          %v360 = vld [vmem:[#allocation8 + $0x8] sm:$0xf]
          %v361 = vld [vmem:[#allocation8 + $0xc] sm:$0xf]
          %v362 = vld [vmem:[#allocation8 + $0x10] sm:$0xf]
          %v363 = vld [vmem:[#allocation8 + $0x14] sm:$0xf]
          %v364 = vld [vmem:[#allocation8 + $0x18] sm:$0xf]
          %v365 = vld [vmem:[#allocation8 + $0x1c] sm:$0xf]
          %v366 = vld [vmem:[#allocation8 + $0x20] sm:$0xf]
          %v367 = vld [vmem:[#allocation8 + $0x24] sm:$0xf]
          %v368 = vld [vmem:[#allocation8 + $0x28] sm:$0xf]
          %v369 = vld [vmem:[#allocation8 + $0x2c] sm:$0xf]
          %v370 = vld [vmem:[#allocation8 + $0x30] sm:$0xf]
          %v371 = vld [vmem:[#allocation8 + $0x34] sm:$0xf]
          %v372 = vld [vmem:[#allocation8 + $0x38] sm:$0xf]
          %v373 = vld [vmem:[#allocation8 + $0x3c] sm:$0xf]
          %v374 = vld [vmem:[%s3] sm:$0x1]
          %v376 = vlaneseq
          %v377 = vshrl.u32 %v376, 7
          %v378 = vsub.s32 0, %v377
          %v379 = vrot.slane %v374, %v378
          %v397 = vunpack.c.l.b16 %v358
          %v398 = vunpack.c.l.b16 %v359
          %v399 = vunpack.c.l.b16 %v360
          %v400 = vunpack.c.l.b16 %v361
          %v401 = vunpack.c.l.b16 %v362
          %v402 = vunpack.c.l.b16 %v363
          %v403 = vunpack.c.l.b16 %v364
          %v404 = vunpack.c.l.b16 %v365
          %v405 = vunpack.c.l.b16 %v366
          %v406 = vunpack.c.l.b16 %v367
          %v407 = vunpack.c.l.b16 %v368
          %v408 = vunpack.c.l.b16 %v369
          %v409 = vunpack.c.l.b16 %v370
          %v410 = vunpack.c.l.b16 %v371
          %v411 = vunpack.c.l.b16 %v372
          %v412 = vunpack.c.l.b16 %v373
          %v413 = vpack.c.b16 %v398, %v397
          %v414 = vpack.c.b16 %v400, %v399
          %v415 = vpack.c.b16 %v402, %v401
          %v416 = vpack.c.b16 %v404, %v403
          %v417 = vpack.c.b16 %v406, %v405
          %v418 = vpack.c.b16 %v408, %v407
          %v419 = vpack.c.b16 %v410, %v409
          %v420 = vpack.c.b16 %v412, %v411
          %429 = vmatprep.subr.bf16.mxu0 0
          %430 = vmatpush1.bf16.msra.mxu0 %v413
          %431 = vmatprep.subr.bf16.mxu0 0
          %432 = vmatpush1.bf16.msra.mxu0 %v414
          %433 = vmatprep.subr.bf16.mxu0 0
          %434 = vmatpush1.bf16.msra.mxu0 %v415
          %435 = vmatprep.subr.bf16.mxu0 0
          %436 = vmatpush1.bf16.msra.mxu0 %v416
          %437 = vmatprep.subr.bf16.mxu0 0
          %438 = vmatpush1.bf16.msra.mxu0 %v417
          %439 = vmatprep.subr.bf16.mxu0 0
          %440 = vmatpush1.bf16.msra.mxu0 %v418
          %441 = vmatprep.subr.bf16.mxu0 0
          %442 = vmatpush1.bf16.msra.mxu0 %v419
          %443 = vmatprep.subr.bf16.mxu0 0
          %444 = vmatpush1.bf16.msra.mxu0 %v420
          %445 = vmatprep.subr.bf16.mxu0 0
          %446 = vmatpush1.bf16.msra.mxu0 0
          %447 = vmatprep.subr.bf16.mxu0 0
          %448 = vmatpush1.bf16.msra.mxu0 0
          %449 = vmatprep.subr.bf16.mxu0 0
          %450 = vmatpush1.bf16.msra.mxu0 0
          %451 = vmatprep.subr.bf16.mxu0 0
          %452 = vmatpush1.bf16.msra.mxu0 0
          %453 = vmatprep.subr.bf16.mxu0 0
          %454 = vmatpush1.bf16.msra.mxu0 0
          %455 = vmatprep.subr.bf16.mxu0 0
          %456 = vmatpush1.bf16.msra.mxu0 0
          %457 = vmatprep.subr.bf16.mxu0 0
          %458 = vmatpush1.bf16.msra.mxu0 0
          %459 = vmatprep.subr.bf16.mxu0 0
          %460 = vmatpush1.bf16.msra.mxu0 0
          %461 = vmatprep.mubr.bf16.mxu0 0
          %462 = vmatmul.mubr.bf16.gmra.mrb[0].mxu0 %v357
          %v463 = vpop.f32.mrb[0].mxu0
          %v464 = vadd.f32 %v379, %v463
          %v465 = vpop.f32.mrb[0].mxu0
          %v466 = vpop.f32.mrb[0].mxu0
          %v467 = vadd.f32 %v379, %v466
          %v468 = vpop.f32.mrb[0].mxu0
          %469 = vdwg.mxu0
          %v470 = vmax.f32 %v464, 0.0
          %v471 = vmax.f32 %v467, 0.0
          %v472 = vpack.c.bf16 %v471, %v470
          %v474 = vunpack.c.l.b16 %v472
          %v475 = vunpack.c.h.b16 %v472
          %v476 = vpack.c.b16 %v474, %v474
          %v477 = vpack.c.b16 %v475, %v475
          %480 = vst [vmem:[%s267] sm:$0xf] %v476
          %481 = vst [vmem:[%s267 + $0x4] sm:$0xf] %v477
        $region56: #{tpu_custom_call.1} parent=35 // pred_fallthru
          _
        %s482 = sand.u32 %s138, 1
        %s483 = scalar_lea.sflag [#allocation5], %s482
        %s484 = sand.u32 %s138, 1
        %s485 = smul.addr %s484, 8
        %s486 = scalar_lea.vmem [#allocation9], %s485
        // Predicated region
        $region57: #{tpu_custom_call.1} parent=35 // pred_check
          %p487 = pneg %p148
        $region58: #{tpu_custom_call.1} parent=35 // pred_check_branch
          %489 = sbr.rel (%p487) target = $region60
        $region59: #{tpu_custom_call.1} parent=35 // pred_region
          %s490 = smul.u32 2, %s26
          %s492 = ssub.s32 128, 128
          %493 = vsyncadd %s483, %s492
          %s494 = smul.addr %s490, 64
          %s495 = scalar_lea.hbm %s4, %s494
          %s496 = sshll.u32 %s486, 4
          %s497 = int_to_ptr.vmem [resolvable:$true] %s496
          %502 = dma.vmem_to_hbm [thread:$0]  %s497, 128, %s495, %s483, 64, 64, 4
        $region60: #{tpu_custom_call.1} parent=35 // pred_fallthru
          _
      $region36: #{tpu_custom_call.1} parent=5 // pred_fallthru
        _
      %p503 = scmp.le.s32.totalorder 2, %s17
      // Predicated region
      $region61: #{tpu_custom_call.1} parent=5 // pred_check
        %p504 = pneg %p503
      $region62: #{tpu_custom_call.1} parent=5 // pred_check_branch
        %506 = sbr.rel (%p504) target = $region64
      $region63: #{tpu_custom_call.1} parent=5 // pred_region
        %s507 = ssub.s32 %s17, 2
        // Predicated region
        $region65: #{tpu_custom_call.1} parent=63 // pred_check
          %p508 = pneg %p154
        $region66: #{tpu_custom_call.1} parent=63 // pred_check_branch
          %510 = sbr.rel (%p508) target = $region68
        $region67: #{tpu_custom_call.1} parent=63 // pred_region
          %s511 = sand.u32 %s139, 1
          %s512 = scalar_lea.sflag [#allocation5], %s511
          %s513 = sand.u32 %s139, 1
          %s514 = smul.addr %s513, 8
          %s515 = scalar_lea.vmem [#allocation9], %s514
          %516 = dma.done %s512, 128
        $region68: #{tpu_custom_call.1} parent=63 // pred_fallthru
          _
      $region64: #{tpu_custom_call.1} parent=5 // pred_fallthru
        _
    $region6: #{tpu_custom_call.1} parent=1 // loop_footer
      %s21 = sadd.s32 1, %s17
    $region7: #{tpu_custom_call.1} parent=1 // loop_footer_branch
      %16 = sbr.rel target = $region3
    $region8: #{tpu_custom_call.1} parent=1 // loop_exit
      _
    %517 = vsyncpa [#allocation4], 1
    %s518 = scalar_lea.sflag [#allocation4], 1
    %519 = vsyncpa %s518, 1
    %520 = vsyncpa [#allocation7], 1
    %521 = vsyncpa [#allocation5], 1
    %s522 = scalar_lea.sflag [#allocation5], 1
    %523 = vsyncpa %s522, 1

</llo_original>
